<compile_context>
chip_gen: v6e
topology: v6e:2x2x1
jax: 0.10.0
libtpu: 0.0.40
codegen_flags: <defaults>
</compile_context>

<pallas_src>
import jax
import jax.numpy as jnp
from jax.experimental import pallas as pl
from jax.experimental.pallas import tpu as pltpu


def _wmse_partial_kernel(pred_ref, targ_ref, out_ref):
    """Accumulate per-row sums of squared differences over the last grid axis.

    pred_ref/targ_ref: (rt, lt) VMEM blocks.  out_ref: (rt, 1) f32 block that
    keeps the same block index across the lane (reduction) axis, so it stays
    resident in VMEM and acts as the accumulator.
    """
    j = pl.program_id(2)

    @pl.when(j == 0)
    def _init():
        out_ref[...] = jnp.zeros_like(out_ref)

    d = pred_ref[...].astype(jnp.float32) - targ_ref[...].astype(jnp.float32)
    # Per-step XLU lane reduce is free filler in an HBM-bound kernel and keeps
    # the accumulator narrow (rt, 1) instead of a full (rt, lt) f32 scratch.
    out_ref[...] += jnp.sum(d * d, axis=1, keepdims=True)


def _pick_tile(dim, unit, cap):
    """Largest multiple of `unit` that divides `dim`, capped at `cap`.

    Returns 0 if no such tile exists (caller decides the fallback) so we never
    silently produce an over-sized or non-aligned block.
    """
    t = (min(cap, dim) // unit) * unit
    while t >= unit:
        if dim % t == 0:
            return t
        t -= unit
    return 0


def _vmem_capacity_bytes():
    try:
        return int(pltpu.get_tpu_info().vmem_capacity_bytes)
    except Exception:
        return 64 << 20  # conservative: v7x per-TensorCore VMEM


def weighted_mse_loss(predictions, targets, weight1=10.0, weight2=1.0):
    """Pallas implementation of WeightedMSELoss.forward.

    predictions, targets: (N, C, H, W) with C >= 2.  Only channels 0 and 1
    contribute (weighted by weight1 / weight2) and the mean divides by
    N*2*H*W — exactly the PyTorch module's semantics.
    """
    n, c, h, w = predictions.shape
    assert c >= 2, "module requires at least 2 channels"
    hw = h * w

    itemsize = jnp.dtype(predictions.dtype).itemsize
    row_unit = max(8, 32 // max(itemsize, 1))      # sublane unit per dtype packing

    vmem_cap = _vmem_capacity_bytes()
    # 2 inputs x 2 pipeline buffers of (rt, lt) must fit in ~60% of VMEM.
    budget = int(vmem_cap * 0.6)

    denom = jnp.float32(n) * 2.0 * jnp.float32(hw)
    w1 = jnp.float32(weight1)
    w2 = jnp.float32(weight2)

    if _pick_tile(hw, 128, 8192):
        # ---- Fast path: stream only channels 0 and 1 via the lane index_map.
        pred2 = predictions.reshape(n, c * hw)     # free contiguous view
        targ2 = targets.reshape(n, c * hw)

        rt = _pick_tile(n, row_unit, 256) or n     # full N is always a legal block
        lane_cap = max(128, budget // (4 * itemsize * rt))
        lt = _pick_tile(hw, 128, min(8192, lane_cap))
        nr = n // rt
        nlc = hw // lt                             # lane blocks per channel
        nl = nlc

        in_spec = pl.BlockSpec((rt, lt), lambda i, ch, j: (i, ch * nlc + j))
        out_spec = pl.BlockSpec((None, rt, 1), lambda i, ch, j: (ch, i, 0))

        vmem_limit = int(min(vmem_cap,
                             max(32 << 20, 4 * itemsize * rt * lt + (8 << 20))))

        partials = pl.pallas_call(
            _wmse_partial_kernel,
            out_shape=jax.ShapeDtypeStruct((2, n, 1), jnp.float32),
            grid_spec=pltpu.PrefetchScalarGridSpec(
                num_scalar_prefetch=0,
                grid=(nr, 2, nl),
                in_specs=[in_spec, in_spec],
                out_specs=out_spec,
            ),
            compiler_params=pltpu.CompilerParams(
                # Size-2 channel axis guarantees >=2 parallel blocks so both
                # v7x TensorCores stream HBM even when nr == 1.
                dimension_semantics=("parallel", "parallel", "arbitrary"),
                vmem_limit_bytes=vmem_limit,
            ),
        )(pred2, targ2)

        ch_sums = jnp.sum(partials[:, :, 0], axis=1)        # (2,)
        return (w1 * ch_sums[0] + w2 * ch_sums[1]) / denom

    # ---- Fallback path: H*W has no multiple-of-128 divisor, so pre-slice the
    # two used channels (one small XLA copy) and run with lt == H*W (the full
    # last dim of the (N*2, HW) slab is always a legal block width).
    pred2 = predictions[:, :2].reshape(n * 2, hw)
    targ2 = targets[:, :2].reshape(n * 2, hw)
    r = n * 2
    rt_cap = max(row_unit, min(256, budget // max(1, 4 * itemsize * hw)))
    rt = _pick_tile(r, row_unit, rt_cap) or r
    nr = r // rt

    in_spec = pl.BlockSpec((rt, hw), lambda i, ch, j: (i, 0))
    out_spec = pl.BlockSpec((None, rt, 1), lambda i, ch, j: (0, i, 0))

    vmem_limit = int(min(vmem_cap,
                         max(32 << 20, 4 * itemsize * rt * hw + (8 << 20))))

    partials = pl.pallas_call(
        _wmse_partial_kernel,
        out_shape=jax.ShapeDtypeStruct((1, r, 1), jnp.float32),
        grid_spec=pltpu.PrefetchScalarGridSpec(
            num_scalar_prefetch=0,
            grid=(nr, 1, 1),
            in_specs=[in_spec, in_spec],
            out_specs=out_spec,
        ),
        compiler_params=pltpu.CompilerParams(
            dimension_semantics=("parallel", "arbitrary", "arbitrary"),
            vmem_limit_bytes=vmem_limit,
        ),
    )(pred2, targ2)

    row_sums = partials[0, :, 0]                              # (n*2,)
    w_row = jnp.tile(jnp.array([weight1, weight2], jnp.float32), (n,))
    return jnp.dot(row_sums, w_row) / denom


def _reference(predictions, targets, weight1, weight2):
    sq = (predictions.astype(jnp.float32) - targets.astype(jnp.float32)) ** 2
    return jnp.mean(
        jnp.concatenate([weight1 * sq[:, 0:1], weight2 * sq[:, 1:2]], axis=1)
    )


if __name__ == "__main__":
    key = jax.random.PRNGKey(0)
    ks = jax.random.split(key, 8)

    # Case 1: shape implied by the module spec (batch=2, channels=4, 16x16).
    p1 = jax.random.normal(ks[0], (2, 4, 16, 16), dtype=jnp.float32)
    t1 = jax.random.normal(ks[1], (2, 4, 16, 16), dtype=jnp.float32)
    loss1 = jax.block_until_ready(weighted_mse_loss(p1, t1, 10.0, 1.0))
    ref1 = _reference(p1, t1, 10.0, 1.0)
    assert jnp.allclose(loss1, ref1, rtol=1e-4, atol=1e-5), (loss1, ref1)

    # Case 2: odd channel count + H*W spanning multiple lane-tile steps
    # (exercises the resident-output accumulation path; channel 2 never DMA'd).
    p2 = jax.random.normal(ks[2], (2, 3, 96, 96), dtype=jnp.float32)
    t2 = jax.random.normal(ks[3], (2, 3, 96, 96), dtype=jnp.float32)
    loss2 = jax.block_until_ready(weighted_mse_loss(p2, t2, 10.0, 1.0))
    ref2 = _reference(p2, t2, 10.0, 1.0)
    assert jnp.allclose(loss2, ref2, rtol=1e-4, atol=1e-5), (loss2, ref2)

    # Case 3: exactly 2 channels.
    p3 = jax.random.normal(ks[4], (4, 2, 64, 64), dtype=jnp.float32)
    t3 = jax.random.normal(ks[5], (4, 2, 64, 64), dtype=jnp.float32)
    loss3 = jax.block_until_ready(weighted_mse_loss(p3, t3, 10.0, 1.0))
    ref3 = _reference(p3, t3, 10.0, 1.0)
    assert jnp.allclose(loss3, ref3, rtol=1e-4, atol=1e-5), (loss3, ref3)

    # Case 4: awkward H*W (not a multiple of 128) -> fallback pre-slice path.
    p4 = jax.random.normal(ks[6], (2, 4, 10, 10), dtype=jnp.float32)
    t4 = jax.random.normal(ks[7], (2, 4, 10, 10), dtype=jnp.float32)
    loss4 = jax.block_until_ready(weighted_mse_loss(p4, t4, 10.0, 1.0))
    ref4 = _reference(p4, t4, 10.0, 1.0)
    assert jnp.allclose(loss4, ref4, rtol=1e-4, atol=1e-5), (loss4, ref4)

    print("KERNEL_OK")
</pallas_src>

<mosaic_0001>
module attributes {stable_mosaic.version = 11 : i64} {
  func.func @_wmse_partial_kernel(%arg0: i32, %arg1: i32, %arg2: i32, %arg3: memref<2x256xf32, #tpu.memory_space<vmem>>, %arg4: memref<2x256xf32, #tpu.memory_space<vmem>>, %arg5: memref<1x2x1xf32, #tpu.memory_space<vmem>>) attributes {dimension_semantics = [#tpu.dimension_semantics<parallel>, #tpu.dimension_semantics<parallel>, #tpu.dimension_semantics<arbitrary>], iteration_bounds = array<i64: 1, 2, 1>, scalar_prefetch = 0 : i64, scratch_operands = 0 : i64, tpu.core_type = #tpu.core_type<tc>, window_params = [{transform_indices = @transform_0, window_bounds = array<i64: 2, 256>}, {transform_indices = @transform_1, window_bounds = array<i64: 2, 256>}, {transform_indices = @transform_2, window_bounds = array<i64: 1, 2, 1>}]} {
    %c0_i32 = arith.constant 0 : i32
    %0 = arith.cmpi eq, %arg2, %c0_i32 : i32
    %1 = arith.extui %0 : i1 to i32
    %c0_i32_0 = arith.constant 0 : i32
    %2 = arith.cmpi ne, %1, %c0_i32_0 : i32
    scf.if %2 {
      %cst_10 = arith.constant 0.000000e+00 : f32
      %15 = vector.broadcast %cst_10 : f32 to vector<2x1xf32>
      %c0_11 = arith.constant 0 : index
      %c0_12 = arith.constant 0 : index
      %c0_13 = arith.constant 0 : index
      %16 = vector.load %arg5[%c0_11, %c0_12, %c0_13] : memref<1x2x1xf32, #tpu.memory_space<vmem>>, vector<1x2x1xf32>
      %17 = vector.shape_cast %16 : vector<1x2x1xf32> to vector<2x1xf32>
      %18 = vector.shape_cast %15 : vector<2x1xf32> to vector<1x2x1xf32>
      tpu.vector_store %arg5[%c0_11, %c0_12, %c0_13], %18 {strides = array<i32>} : memref<1x2x1xf32, #tpu.memory_space<vmem>>, vector<1x2x1xf32>,
    } else {
    }
    %c0 = arith.constant 0 : index
    %c0_1 = arith.constant 0 : index
    %3 = vector.load %arg3[%c0, %c0_1] : memref<2x256xf32, #tpu.memory_space<vmem>>, vector<2x256xf32>
    %c0_2 = arith.constant 0 : index
    %c0_3 = arith.constant 0 : index
    %4 = vector.load %arg4[%c0_2, %c0_3] : memref<2x256xf32, #tpu.memory_space<vmem>>, vector<2x256xf32>
    %5 = arith.subf %3, %4 : vector<2x256xf32>
    %c0_4 = arith.constant 0 : index
    %c0_5 = arith.constant 0 : index
    %c0_6 = arith.constant 0 : index
    %6 = vector.load %arg5[%c0_4, %c0_5, %c0_6] : memref<1x2x1xf32, #tpu.memory_space<vmem>>, vector<1x2x1xf32>
    %7 = vector.shape_cast %6 : vector<1x2x1xf32> to vector<2x1xf32>
    %8 = arith.mulf %5, %5 : vector<2x256xf32>
    %cst = arith.constant dense<0.000000e+00> : vector<2xf32>
    %9 = vector.multi_reduction <add>, %8, %cst [1] : vector<2x256xf32> to vector<2xf32>
    %10 = vector.shape_cast %9 : vector<2xf32> to vector<2x1xf32>
    %11 = arith.addf %7, %10 : vector<2x1xf32>
    %c0_7 = arith.constant 0 : index
    %c0_8 = arith.constant 0 : index
    %c0_9 = arith.constant 0 : index
    %12 = vector.load %arg5[%c0_7, %c0_8, %c0_9] : memref<1x2x1xf32, #tpu.memory_space<vmem>>, vector<1x2x1xf32>
    %13 = vector.shape_cast %12 : vector<1x2x1xf32> to vector<2x1xf32>
    %14 = vector.shape_cast %11 : vector<2x1xf32> to vector<1x2x1xf32>
    tpu.vector_store %arg5[%c0_7, %c0_8, %c0_9], %14 {strides = array<i32>} : memref<1x2x1xf32, #tpu.memory_space<vmem>>, vector<1x2x1xf32>,
    return
  }
  func.func @transform_0(%arg0: i32, %arg1: i32, %arg2: i32) -> (i32, i32) {
    %c1_i32 = arith.constant 1 : i32
    %0 = arith.muli %arg1, %c1_i32 : i32
    %1 = arith.addi %0, %arg2 : i32
    %c0_i32 = arith.constant 0 : i32
    return %arg0, %1 : i32, i32
  }
  func.func @transform_1(%arg0: i32, %arg1: i32, %arg2: i32) -> (i32, i32) {
    %c1_i32 = arith.constant 1 : i32
    %0 = arith.muli %arg1, %c1_i32 : i32
    %1 = arith.addi %0, %arg2 : i32
    %c0_i32 = arith.constant 0 : i32
    return %arg0, %1 : i32, i32
  }
  func.func @transform_2(%arg0: i32, %arg1: i32, %arg2: i32) -> (i32, i32, i32) {
    %c0_i32 = arith.constant 0 : i32
    %c0_i32_0 = arith.constant 0 : i32
    return %arg1, %arg0, %c0_i32 : i32, i32, i32
  }
}

</mosaic_0001>

<llo_original>
// kernel: tpu_custom_call.1
$region0: #{tpu_custom_call.1}
  #allocation0 [shape = 'u32[]', space=smem, size = 0x4, offset = 0x4, fixed_abs, tag = 'smem constant byte address 0x4 - core index']
  #allocation1 [shape = 'u32[144,128]{1,0:T(1,128)}', space=vmem, size = 0x12000, scoped, tag = 'internal scratch']
  %s0 = inlined_call_operand.hbm [shape: f32[2,1024], index: 0, kind: input, shape index: {}]
  %s1 = inlined_call_operand.hbm [shape: f32[2,1024], index: 1, kind: input, shape index: {}]
  %s2 = inlined_call_operand.vmem [shape: f32[2,2,1], index: 2, kind: output, shape index: {}]
  %s3 = sld [smem:[#allocation0]]
  $region53: #{tpu_custom_call.1} parent=0
    _
  %s5 = ssub.s32 1, %s3
  %s6 = scalar_select 0, %s5, %s3
  $region1: #{tpu_custom_call.1} parent=0
    #allocation2 [shape = 'u8[4096]{0}', space=vmem, size = 0x1000, scoped, tag = 'input window, operand 0']
    #allocation3 [shape = 's32[2]{0}', space=sflag, size = 0x8, scoped, tag = 'scoped memory for tpu_custom_call.1']
    #allocation4 [shape = 'u8[4096]{0}', space=vmem, size = 0x1000, scoped, tag = 'input window, operand 1']
    #allocation5 [shape = 's32[2]{0}', space=sflag, size = 0x8, scoped, tag = 'scoped memory for tpu_custom_call.1']
    %7 = vsyncpa [#allocation3], 0
    %s8 = scalar_lea.sflag [#allocation3], 1
    %9 = vsyncpa %s8, 0
    %10 = vsyncpa [#allocation5], 0
    %s11 = scalar_lea.sflag [#allocation5], 1
    %12 = vsyncpa %s11, 0
    loop: start=0, step=1, limit=4
    $region2: #{tpu_custom_call.1} parent=1 // loop_pre_header
      _
    $region3: #{tpu_custom_call.1} parent=1 // loop_header
      %s14 = sphi 0, %s18
      %p15 = scmp.ge.s32.totalorder %s14, 4
      %s21 = sphi 0, %s40
      %s22 = sphi 0, %s36
      %s23 = sphi 0, %s32
      %s24 = sphi 0, %s21
      %s25 = sphi 0, %s22
      %s26 = sphi 0, %s23
      %s27 = sphi 0, %s24
      %s28 = sphi 0, %s25
      %s29 = sphi 0, %s26
      %s47 = sphi 0, %s49
      %s50 = sphi 0, %s47
      %s51 = sphi 0, %s50
      %s67 = sphi 0, %s51
      %s77 = sphi 0, %s79
      %s80 = sphi 0, %s77
      %s81 = sphi 0, %s80
      %s97 = sphi 0, %s81
      %s105 = sphi 0, %s107
      %s108 = sphi 0, %s105
      %s109 = sphi 0, %s108
      %s125 = sphi 0, %s109
    $region4: #{tpu_custom_call.1} parent=1 // loop_header_branch
      %17 = sbr.rel (%p15) target = $region8
    $region5: #{tpu_custom_call.1} parent=1 // loop_body
      %s19 = ssub.s32 %s14, 1
      %s20 = ssub.s32 %s14, 2
      %s30 = sadd.s32 1, %s23
      %p31 = scmp.ge.s32.totalorder %s30, 1
      %s32 = scalar_select %p31, 0, %s30
      %s33 = sadd.s32 1, %s22
      %s34 = scalar_select %p31, %s33, %s22
      %p35 = scmp.ge.s32.totalorder %s34, 2
      %s36 = scalar_select %p35, 0, %s34
      %s37 = sadd.s32 1, %s21
      %s38 = scalar_select %p35, %s37, %s21
      %p39 = scmp.ge.s32.totalorder %s38, 1
      %s40 = scalar_select %p39, 0, %s38
      %s41 = sadd.s32 %s22, %s23
      %s42 = sadd.s32 %s36, %s32
      %s43 = ssub.s32 %s21, %s40
      %s44 = ssub.s32 %s41, %s42
      %s45 = sor.u32 %s43, %s44
      %p46 = scmp.eq.s32.totalorder %s45, 0
      %s48 = sadd.s32 %s47, 1
      %s49 = scalar_select %p46, %s47, %s48
      %p52 = pneg %p46
      %p53 = scmp.eq.s32.totalorder %s14, 1
      %p54 = por %p52, %p53
      %p55 = scmp.ne.s32.totalorder %s47, %s50
      %p56 = scmp.eq.s32.totalorder %s14, 0
      %p57 = por %p55, %p56
      %p58 = scmp.ne.s32.totalorder %s47, %s50
      %p59 = scmp.eq.s32.totalorder %s19, 1
      %p60 = por %p58, %p59
      %p61 = scmp.ne.s32.totalorder %s50, %s51
      %p62 = scmp.eq.s32.totalorder %s19, 0
      %p63 = por %p61, %p62
      %p64 = scmp.ne.s32.totalorder %s50, %s51
      %p65 = scmp.eq.s32.totalorder %s20, 1
      %p66 = por %p64, %p65
      %p68 = scmp.ne.s32.totalorder %s51, %s67
      %p69 = scmp.eq.s32.totalorder %s20, 0
      %p70 = por %p68, %p69
      %s71 = sadd.s32 %s22, %s23
      %s72 = sadd.s32 %s36, %s32
      %s73 = ssub.s32 %s21, %s40
      %s74 = ssub.s32 %s71, %s72
      %s75 = sor.u32 %s73, %s74
      %p76 = scmp.eq.s32.totalorder %s75, 0
      %s78 = sadd.s32 %s77, 1
      %s79 = scalar_select %p76, %s77, %s78
      %p82 = pneg %p76
      %p83 = scmp.eq.s32.totalorder %s14, 1
      %p84 = por %p82, %p83
      %p85 = scmp.ne.s32.totalorder %s77, %s80
      %p86 = scmp.eq.s32.totalorder %s14, 0
      %p87 = por %p85, %p86
      %p88 = scmp.ne.s32.totalorder %s77, %s80
      %p89 = scmp.eq.s32.totalorder %s19, 1
      %p90 = por %p88, %p89
      %p91 = scmp.ne.s32.totalorder %s80, %s81
      %p92 = scmp.eq.s32.totalorder %s19, 0
      %p93 = por %p91, %p92
      %p94 = scmp.ne.s32.totalorder %s80, %s81
      %p95 = scmp.eq.s32.totalorder %s20, 1
      %p96 = por %p94, %p95
      %p98 = scmp.ne.s32.totalorder %s81, %s97
      %p99 = scmp.eq.s32.totalorder %s20, 0
      %p100 = por %p98, %p99
      %s101 = ssub.s32 %s22, %s36
      %s102 = ssub.s32 %s21, %s40
      %s103 = sor.u32 %s101, %s102
      %p104 = scmp.eq.s32.totalorder %s103, 0
      %s106 = sadd.s32 %s105, 1
      %s107 = scalar_select %p104, %s105, %s106
      %p110 = pneg %p104
      %p111 = scmp.eq.s32.totalorder %s14, 1
      %p112 = por %p110, %p111
      %p113 = scmp.ne.s32.totalorder %s105, %s108
      %p114 = scmp.eq.s32.totalorder %s14, 0
      %p115 = por %p113, %p114
      %p116 = scmp.ne.s32.totalorder %s105, %s108
      %p117 = scmp.eq.s32.totalorder %s19, 1
      %p118 = por %p116, %p117
      %p119 = scmp.ne.s32.totalorder %s108, %s109
      %p120 = scmp.eq.s32.totalorder %s19, 0
      %p121 = por %p119, %p120
      %p122 = scmp.ne.s32.totalorder %s108, %s109
      %p123 = scmp.eq.s32.totalorder %s20, 1
      %p124 = por %p122, %p123
      %p126 = scmp.ne.s32.totalorder %s109, %s125
      %p127 = scmp.eq.s32.totalorder %s20, 0
      %p128 = por %p126, %p127
      %p129 = scmp.le.s32.totalorder 1, %s14
      %p130 = scmp.lt.s32.totalorder %s14, 3
      %p131 = pnand %p129, %p130
      %p132 = pneg %p131
      // Predicated region
      $region9: #{tpu_custom_call.1} parent=5 // pred_check
        _
      $region10: #{tpu_custom_call.1} parent=5 // pred_check_branch
        %134 = sbr.rel (%p131) target = $region12
      $region11: #{tpu_custom_call.1} parent=5 // pred_region
        %s135 = ssub.s32 %s14, 1
      $region12: #{tpu_custom_call.1} parent=5 // pred_fallthru
        _
      %p136 = scmp.lt.s32.totalorder %s14, 2
      // Predicated region
      $region13: #{tpu_custom_call.1} parent=5 // pred_check
        %p137 = pneg %p136
      $region14: #{tpu_custom_call.1} parent=5 // pred_check_branch
        %139 = sbr.rel (%p137) target = $region16
      $region15: #{tpu_custom_call.1} parent=5 // pred_region
        // Predicated region
        $region17: #{tpu_custom_call.1} parent=15 // pred_check
          %p140 = pneg %p57
        $region18: #{tpu_custom_call.1} parent=15 // pred_check_branch
          %142 = sbr.rel (%p140) target = $region20
        $region19: #{tpu_custom_call.1} parent=15 // pred_region
          %s143 = sand.u32 %s47, 1
          %s144 = scalar_lea.sflag [#allocation3], %s143
          %s145 = sand.u32 %s47, 1
          %s146 = smul.addr %s145, 4
          %s147 = scalar_lea.vmem [#allocation2], %s146
          %s148 = sadd.s32 %s22, %s23
          %s149 = smul.u32 2, %s148
          %s151 = ssub.s32 64, 64
          %152 = vsyncadd %s144, %s151
          %s153 = smul.addr %s21, 8
          %s154 = sadd.s32 %s149, %s153
          %s155 = smul.addr %s154, 32
          %s156 = scalar_lea.hbm %s0, %s155
          %s158 = sshll.u32 %s147, 4
          %s159 = int_to_ptr.vmem [resolvable:$true] %s158
          %161 = dma.hbm_to_vmem [thread:$0]  %s156, 64, %s159, %s144
        $region20: #{tpu_custom_call.1} parent=15 // pred_fallthru
          _
        // Predicated region
        $region21: #{tpu_custom_call.1} parent=15 // pred_check
          %p162 = pneg %p87
        $region22: #{tpu_custom_call.1} parent=15 // pred_check_branch
          %164 = sbr.rel (%p162) target = $region24
        $region23: #{tpu_custom_call.1} parent=15 // pred_region
          %s165 = sand.u32 %s77, 1
          %s166 = scalar_lea.sflag [#allocation5], %s165
          %s167 = sand.u32 %s77, 1
          %s168 = smul.addr %s167, 4
          %s169 = scalar_lea.vmem [#allocation4], %s168
          %s170 = sadd.s32 %s22, %s23
          %s171 = smul.u32 2, %s170
          %s173 = ssub.s32 64, 64
          %174 = vsyncadd %s166, %s173
          %s175 = smul.addr %s21, 8
          %s176 = sadd.s32 %s171, %s175
          %s177 = smul.addr %s176, 32
          %s178 = scalar_lea.hbm %s1, %s177
          %s180 = sshll.u32 %s169, 4
          %s181 = int_to_ptr.vmem [resolvable:$true] %s180
          %183 = dma.hbm_to_vmem [thread:$0]  %s178, 64, %s181, %s166
        $region24: #{tpu_custom_call.1} parent=15 // pred_fallthru
          _
      $region16: #{tpu_custom_call.1} parent=5 // pred_fallthru
        _
      %p184 = scmp.le.s32.totalorder 1, %s14
      %p185 = scmp.lt.s32.totalorder %s14, 3
      %p186 = pnand %p184, %p185
      %p187 = pneg %p186
      // Predicated region
      $region25: #{tpu_custom_call.1} parent=5 // pred_check
        _
      $region26: #{tpu_custom_call.1} parent=5 // pred_check_branch
        %189 = sbr.rel (%p186) target = $region28
      $region27: #{tpu_custom_call.1} parent=5 // pred_region
        %s190 = ssub.s32 %s14, 1
        %s191 = sand.u32 %s50, 1
        %s192 = scalar_lea.sflag [#allocation3], %s191
        %s193 = sand.u32 %s50, 1
        %s194 = smul.addr %s193, 4
        %s195 = scalar_lea.vmem [#allocation2], %s194
        // Predicated region
        $region29: #{tpu_custom_call.1} parent=27 // pred_check
          %p196 = pneg %p63
        $region30: #{tpu_custom_call.1} parent=27 // pred_check_branch
          %198 = sbr.rel (%p196) target = $region32
        $region31: #{tpu_custom_call.1} parent=27 // pred_region
          %199 = dma.done %s192, 64
        $region32: #{tpu_custom_call.1} parent=27 // pred_fallthru
          _
        %s200 = sand.u32 %s80, 1
        %s201 = scalar_lea.sflag [#allocation5], %s200
        %s202 = sand.u32 %s80, 1
        %s203 = smul.addr %s202, 4
        %s204 = scalar_lea.vmem [#allocation4], %s203
        // Predicated region
        $region33: #{tpu_custom_call.1} parent=27 // pred_check
          %p205 = pneg %p93
        $region34: #{tpu_custom_call.1} parent=27 // pred_check_branch
          %207 = sbr.rel (%p205) target = $region36
        $region35: #{tpu_custom_call.1} parent=27 // pred_region
          %208 = dma.done %s201, 64
        $region36: #{tpu_custom_call.1} parent=27 // pred_fallthru
          _
        %s209 = sand.u32 %s50, 1
        %s210 = scalar_lea.sflag [#allocation3], %s209
        %s211 = sand.u32 %s50, 1
        %s212 = smul.addr %s211, 4
        %s213 = scalar_lea.vmem [#allocation2], %s212
        %p214 = pneg %p63
        %p215 = pneg %p60
        %s216 = sand.u32 %s80, 1
        %s217 = scalar_lea.sflag [#allocation5], %s216
        %s218 = sand.u32 %s80, 1
        %s219 = smul.addr %s218, 4
        %s220 = scalar_lea.vmem [#allocation4], %s219
        %p221 = pneg %p93
        %p222 = pneg %p90
        %p223 = pneg %p121
        %p224 = pneg %p118
        %p225 = scmp.lt.s32.totalorder %s25, 1
        %s226 = scalar_select %p225, %s25, 1
        %p227 = scmp.lt.s32.totalorder %s24, 0
        %s228 = scalar_select %p227, %s24, 0
        %s229 = sadd.s32 %s228, %s226
        %s230 = smul.addr %s229, 2
        %s231 = scalar_lea.vmem %s2, %s230
        %s232 = sadd.s32 %s25, %s26
        %s233 = smul.u32 2, %s232
        %s234 = sadd.s32 %s25, %s26
        %s235 = smul.u32 2, %s234
        %p236 = scmp.lt.s32.totalorder %s25, 1
        %s237 = scalar_select %p236, %s25, 1
        %p238 = scmp.lt.s32.totalorder %s24, 0
        %s239 = scalar_select %p238, %s24, 0
        %s240 = sadd.s32 %s239, %s237
        %s241 = smul.addr %s240, 2
        %s242 = scalar_lea.vmem %s2, %s241
        %p243 = scmp.eq.s32.totalorder %s26, 0
        // Predicated region
        $region37: #{tpu_custom_call.1} parent=27 // pred_check
          %p244 = pneg %p243
        $region38: #{tpu_custom_call.1} parent=27 // pred_check_branch
          %246 = sbr.rel (%p244) target = $region40
        $region39: #{tpu_custom_call.1} parent=27 // pred_region
          %vm247 = vcmask 1024
          %248 = vst.msk [vmem:[%s242] sm:$0x3] %vm247, 0.0
        $region40: #{tpu_custom_call.1} parent=27 // pred_fallthru
          _
        %v249 = vld [vmem:[%s195] sm:$0xf]
        %v250 = vld [vmem:[%s204] sm:$0xf]
        %v251 = vsub.f32 %v249, %v250
        %v252 = vld [vmem:[%s242] sm:$0x3]
        %v253 = vmul.f32 %v251, %v251
        %v256 = vunpack.c.l.s4 1983009808
        %v257 = vunpack.c.0.s8 %v256
        %v258 = vlaneseq
        %v259 = vshrl.u32 %v258, 7
        %v260 = vsub.s32 %v257, %v259
        %v261 = vrot.slane %v253, %v260
        %v262 = vcombine.high %v261, %v261
        %vm265 = vcmask 1041408
        %v266 = vsel %vm265, %v261, 0.0
        %v267 = vsel %vm265, %v262, 0.0
        %v268 = vadd.f32 %v266, %v267
        %269 = vadd.xlane.f32.xlu0 %v268
        %v270 = vpop.xlane.xlu0 %269
        %v271 = vadd.f32 %v252, %v270
        %vm272 = vcmask 1024
        %273 = vst.msk [vmem:[%s242] sm:$0x3] %vm272, %v271
        %p274 = scmp.lt.s32.totalorder %s25, 1
        %s275 = scalar_select %p274, %s25, 1
        %p276 = scmp.lt.s32.totalorder %s24, 0
        %s277 = scalar_select %p276, %s24, 0
        %s278 = sadd.s32 %s277, %s275
        %s279 = smul.addr %s278, 2
        %s280 = scalar_lea.vmem %s2, %s279
        // Predicated region
        $region41: #{tpu_custom_call.1} parent=27 // pred_check
          %p281 = pneg %p118
        $region42: #{tpu_custom_call.1} parent=27 // pred_check_branch
          %283 = sbr.rel (%p281) target = $region44
        $region43: #{tpu_custom_call.1} parent=27 // pred_region
          _
        $region44: #{tpu_custom_call.1} parent=27 // pred_fallthru
          _
      $region28: #{tpu_custom_call.1} parent=5 // pred_fallthru
        _
      %p284 = scmp.le.s32.totalorder 2, %s14
      // Predicated region
      $region45: #{tpu_custom_call.1} parent=5 // pred_check
        %p285 = pneg %p284
      $region46: #{tpu_custom_call.1} parent=5 // pred_check_branch
        %287 = sbr.rel (%p285) target = $region48
      $region47: #{tpu_custom_call.1} parent=5 // pred_region
        %s288 = ssub.s32 %s14, 2
        // Predicated region
        $region49: #{tpu_custom_call.1} parent=47 // pred_check
          %p289 = pneg %p124
        $region50: #{tpu_custom_call.1} parent=47 // pred_check_branch
          %291 = sbr.rel (%p289) target = $region52
        $region51: #{tpu_custom_call.1} parent=47 // pred_region
          %p292 = scmp.lt.s32.totalorder %s28, 1
          %s293 = scalar_select %p292, %s28, 1
          %p294 = scmp.lt.s32.totalorder %s27, 0
          %s295 = scalar_select %p294, %s27, 0
          %s296 = sadd.s32 %s295, %s293
          %s297 = smul.addr %s296, 2
          %s298 = scalar_lea.vmem %s2, %s297
        $region52: #{tpu_custom_call.1} parent=47 // pred_fallthru
          _
      $region48: #{tpu_custom_call.1} parent=5 // pred_fallthru
        _
    $region6: #{tpu_custom_call.1} parent=1 // loop_footer
      %s18 = sadd.s32 1, %s14
    $region7: #{tpu_custom_call.1} parent=1 // loop_footer_branch
      %13 = sbr.rel target = $region3
    $region8: #{tpu_custom_call.1} parent=1 // loop_exit
      _
    %299 = vsyncpa [#allocation3], 1
    %s300 = scalar_lea.sflag [#allocation3], 1
    %301 = vsyncpa %s300, 1
    %302 = vsyncpa [#allocation5], 1
    %s303 = scalar_lea.sflag [#allocation5], 1
    %304 = vsyncpa %s303, 1

</llo_original>
